<compile_context>
chip_gen: v5e
topology: v5e:2x2
jax: 0.10.0
libtpu: 0.0.40
codegen_flags: <defaults>
</compile_context>

<pallas_src>
import functools

import jax
import jax.numpy as jnp
from jax import lax
from jax.experimental import pallas as pl
from jax.experimental.pallas import tpu as pltpu

BN_EPS = 1e-5
LANE = 128
SUBLANE = 8


def _round_up(v, m):
    return ((v + m - 1) // m) * m


def _pad_to(a, shape):
    out = jnp.zeros(shape, jnp.float32)
    return out.at[tuple(slice(0, s) for s in a.shape)].set(a)


# -----------------------------------------------------------------------------
# Fused Pallas kernel: full simclr.forward in one invocation
# -----------------------------------------------------------------------------
def fused_simclr_kernel(x_ref, adj_ref, bmat_ref,
                        w1_ref, b1_ref, w2_ref, b2_ref,
                        wp1_ref, bp1_ref, wp2_ref, bp2_ref,
                        out_ref, *, num_layers, n_valid):
    adj = adj_ref[...]                     # (N_pad, N_pad) 0/1 dense adjacency
    bmat = bmat_ref[...]                   # (G_pad, N_pad) one-hot pooling matrix
    h = x_ref[...]                         # (N_pad, P) zero-padded node features
    n_pad, p = h.shape
    inv_n = 1.0 / float(n_valid)

    # Row-validity mask: padded node rows must not enter the BN statistics.
    row_ids = lax.broadcasted_iota(jnp.int32, (n_pad, p), 0)
    mask = (row_ids < n_valid).astype(jnp.float32)

    # Accumulator for the (folded) first proj_head Linear: sum_l pooled_l @ Wp1_l.
    acc = jnp.zeros((bmat.shape[0], p), jnp.float32)

    for l in range(num_layers):            # static unroll; num_layers is small
        # GINConv (eps=0): agg = (I + A) @ h
        agg = h + jnp.dot(adj, h, preferred_element_type=jnp.float32)
        # GIN internal MLP: Linear -> ReLU -> Linear
        z = jnp.dot(agg, w1_ref[l], preferred_element_type=jnp.float32) + b1_ref[l]
        z = jnp.maximum(z, 0.0)
        z = jnp.dot(z, w2_ref[l], preferred_element_type=jnp.float32) + b2_ref[l]
        # Encoder: x = F.relu(conv(x)); x = bn(x)   (BN train mode, gamma=1, beta=0)
        z = jnp.maximum(z, 0.0)
        zm = z * mask
        mean = jnp.sum(zm, axis=0, keepdims=True) * inv_n
        ex2 = jnp.sum(zm * zm, axis=0, keepdims=True) * inv_n
        var = jnp.maximum(ex2 - mean * mean, 0.0)        # biased variance, one pass
        h = (z - mean) * lax.rsqrt(var + BN_EPS) * mask
        # global_add_pool == B @ h ; fold proj_head Linear #1 per layer row-chunk.
        pooled = jnp.dot(bmat, h, preferred_element_type=jnp.float32)
        acc = acc + jnp.dot(pooled, wp1_ref[l], preferred_element_type=jnp.float32)

    # proj_head: (folded Linear) -> ReLU -> Linear
    y = jnp.maximum(acc + bp1_ref[...], 0.0)
    out_ref[...] = (jnp.dot(y, wp2_ref[...], preferred_element_type=jnp.float32)
                    + bp2_ref[...])


# -----------------------------------------------------------------------------
# Parameter init (mirrors init_emb: xavier_uniform weights, zero biases)
# -----------------------------------------------------------------------------
def xavier_uniform(key, fan_in, fan_out):
    bound = (6.0 / (fan_in + fan_out)) ** 0.5
    # stored as (in, out) so kernels compute X @ W
    return jax.random.uniform(key, (fan_in, fan_out), jnp.float32, -bound, bound)


def init_params(key, num_features, hidden_dim, num_gc_layers):
    embedding_dim = hidden_dim * num_gc_layers
    params = {"gin": [], "proj": None}
    for layer in range(num_gc_layers):
        in_dim = num_features if layer == 0 else hidden_dim
        key, k1, k2 = jax.random.split(key, 3)
        params["gin"].append(dict(
            w1=xavier_uniform(k1, in_dim, hidden_dim),
            b1=jnp.zeros((1, hidden_dim), jnp.float32),
            w2=xavier_uniform(k2, hidden_dim, hidden_dim),
            b2=jnp.zeros((1, hidden_dim), jnp.float32),
        ))
    key, k1, k2 = jax.random.split(key, 3)
    params["proj"] = dict(
        w1=xavier_uniform(k1, embedding_dim, embedding_dim),
        b1=jnp.zeros((1, embedding_dim), jnp.float32),
        w2=xavier_uniform(k2, embedding_dim, embedding_dim),
        b2=jnp.zeros((1, embedding_dim), jnp.float32),
    )
    return params


def pack_params(params, num_features, hidden_dim, num_gc_layers):
    """Stack per-layer weights and zero-pad every operand to a 128-lane width P."""
    H, L, F = hidden_dim, num_gc_layers, num_features
    E = H * L
    P = _round_up(max(F, H, E), LANE)
    w1 = jnp.stack([_pad_to(p["w1"], (P, P)) for p in params["gin"]])
    b1 = jnp.stack([_pad_to(p["b1"], (1, P)) for p in params["gin"]])
    w2 = jnp.stack([_pad_to(p["w2"], (P, P)) for p in params["gin"]])
    b2 = jnp.stack([_pad_to(p["b2"], (1, P)) for p in params["gin"]])
    pp = params["proj"]
    # Split proj Linear #1 (E, E) into L row-chunks of H rows -> one chunk per layer.
    wp1 = jnp.stack([_pad_to(pp["w1"][l * H:(l + 1) * H, :], (P, P)) for l in range(L)])
    bp1 = _pad_to(pp["b1"], (1, P))
    wp2 = _pad_to(pp["w2"], (P, P))
    bp2 = _pad_to(pp["b2"], (1, P))
    return dict(w1=w1, b1=b1, w2=w2, b2=b2, wp1=wp1, bp1=bp1, wp2=wp2, bp2=bp2)


# -----------------------------------------------------------------------------
# Full forward pass (simclr.forward) — single fused pallas_call
# -----------------------------------------------------------------------------
@functools.partial(jax.jit, static_argnames=("num_graphs", "embedding_dim"))
def simclr_forward(packed, x, edge_index, batch, num_graphs, embedding_dim):
    n, f = x.shape
    num_layers = packed["w1"].shape[0]
    p = packed["w1"].shape[-1]
    n_pad = _round_up(n, SUBLANE)
    g_pad = _round_up(num_graphs, SUBLANE)

    # Dense adjacency: messages flow src -> dst (PyG aggregates x_src at dst).
    src, dst = edge_index[0], edge_index[1]
    adj = jnp.zeros((n_pad, n_pad), jnp.float32).at[dst, src].add(1.0)

    # One-hot pooling matrix B[g, n] = 1 iff batch[n] == g (padded rows/cols all-zero).
    batch_pad = jnp.full((n_pad,), -1, dtype=batch.dtype).at[:n].set(batch)
    bmat = (batch_pad[None, :] ==
            jnp.arange(g_pad, dtype=batch.dtype)[:, None]).astype(jnp.float32)

    # Lane-padded node features.
    x_p = jnp.zeros((n_pad, p), jnp.float32).at[:n, :f].set(x)

    kernel = functools.partial(fused_simclr_kernel,
                               num_layers=num_layers, n_valid=n)
    vmem = pl.BlockSpec(memory_space=pltpu.MemorySpace.VMEM)
    out = pl.pallas_call(
        kernel,
        in_specs=[vmem] * 11,
        out_specs=vmem,
        out_shape=jax.ShapeDtypeStruct((g_pad, p), jnp.float32),
    )(x_p, adj, bmat,
      packed["w1"], packed["b1"], packed["w2"], packed["b2"],
      packed["wp1"], packed["bp1"], packed["wp2"], packed["bp2"])

    return out[:num_graphs, :embedding_dim]


# -----------------------------------------------------------------------------
# Pure-JAX reference (same math, unpadded) for a correctness sanity check
# -----------------------------------------------------------------------------
def simclr_reference(params, x, edge_index, batch, num_graphs):
    n = x.shape[0]
    src, dst = edge_index[0], edge_index[1]
    adj = jnp.zeros((n, n), jnp.float32).at[dst, src].add(1.0)
    bmat = (batch[None, :] ==
            jnp.arange(num_graphs, dtype=batch.dtype)[:, None]).astype(jnp.float32)
    h = x
    pooled_list = []
    for p_l in params["gin"]:
        agg = h + jnp.dot(adj, h, precision=lax.Precision.HIGHEST)
        z = jnp.dot(agg, p_l["w1"], precision=lax.Precision.HIGHEST) + p_l["b1"]
        z = jnp.maximum(z, 0.0)
        z = jnp.dot(z, p_l["w2"], precision=lax.Precision.HIGHEST) + p_l["b2"]
        z = jnp.maximum(z, 0.0)
        mean = jnp.mean(z, axis=0, keepdims=True)
        var = jnp.mean((z - mean) ** 2, axis=0, keepdims=True)   # biased (train mode)
        h = (z - mean) / jnp.sqrt(var + BN_EPS)
        pooled_list.append(jnp.dot(bmat, h, precision=lax.Precision.HIGHEST))
    y = jnp.concatenate(pooled_list, axis=1)
    pp = params["proj"]
    y = jnp.maximum(jnp.dot(y, pp["w1"], precision=lax.Precision.HIGHEST) + pp["b1"], 0.0)
    return jnp.dot(y, pp["w2"], precision=lax.Precision.HIGHEST) + pp["b2"]


# -----------------------------------------------------------------------------
if __name__ == "__main__":
    NUM_FEATURES = 8
    HIDDEN_DIM = 32
    NUM_GC_LAYERS = 3
    N_NODES = 16
    N_GRAPHS = 2
    EMBEDDING_DIM = HIDDEN_DIM * NUM_GC_LAYERS

    key = jax.random.PRNGKey(0)
    key, kx, kp = jax.random.split(key, 3)

    # Node features (data.x)
    x = jax.random.normal(kx, (N_NODES, NUM_FEATURES), jnp.float32)

    # Two graphs of 8 nodes each, ring topology with edges in both directions.
    src_list, dst_list = [], []
    for g in range(N_GRAPHS):
        base = g * 8
        for i in range(8):
            a, b = base + i, base + (i + 1) % 8
            src_list += [a, b]
            dst_list += [b, a]
    edge_index = jnp.array([src_list, dst_list], dtype=jnp.int32)   # (2, 32)
    batch = jnp.repeat(jnp.arange(N_GRAPHS, dtype=jnp.int32), 8)    # (16,)

    params = init_params(kp, NUM_FEATURES, HIDDEN_DIM, NUM_GC_LAYERS)
    packed = pack_params(params, NUM_FEATURES, HIDDEN_DIM, NUM_GC_LAYERS)

    y = simclr_forward(packed, x, edge_index, batch,
                       num_graphs=N_GRAPHS, embedding_dim=EMBEDDING_DIM)
    y = jax.block_until_ready(y)

    y_ref = simclr_reference(params, x, edge_index, batch, N_GRAPHS)
    y_ref = jax.block_until_ready(y_ref)

    assert y.shape == (N_GRAPHS, EMBEDDING_DIM)
    assert jnp.all(jnp.isfinite(y))
    assert jnp.allclose(y, y_ref, rtol=1e-2, atol=1e-2), (
        f"max abs diff {float(jnp.max(jnp.abs(y - y_ref)))}")
    print("KERNEL_OK")
</pallas_src>

<mosaic_0001>
module attributes {stable_mosaic.version = 11 : i64} {
  func.func @fused_simclr_kernel(%arg0: memref<16x128xf32, #tpu.memory_space<vmem>>, %arg1: memref<16x16xf32, #tpu.memory_space<vmem>>, %arg2: memref<8x16xf32, #tpu.memory_space<vmem>>, %arg3: memref<3x128x128xf32, #tpu.memory_space<vmem>>, %arg4: memref<3x1x128xf32, #tpu.memory_space<vmem>>, %arg5: memref<3x128x128xf32, #tpu.memory_space<vmem>>, %arg6: memref<3x1x128xf32, #tpu.memory_space<vmem>>, %arg7: memref<3x128x128xf32, #tpu.memory_space<vmem>>, %arg8: memref<1x128xf32, #tpu.memory_space<vmem>>, %arg9: memref<128x128xf32, #tpu.memory_space<vmem>>, %arg10: memref<1x128xf32, #tpu.memory_space<vmem>>, %arg11: memref<8x128xf32, #tpu.memory_space<vmem>>) attributes {dimension_semantics = [], scalar_prefetch = 0 : i64, scratch_operands = 0 : i64, tpu.core_type = #tpu.core_type<tc>} {
    %c0 = arith.constant 0 : index
    %c0_0 = arith.constant 0 : index
    %0 = vector.load %arg1[%c0, %c0_0] : memref<16x16xf32, #tpu.memory_space<vmem>>, vector<16x16xf32>
    %c0_1 = arith.constant 0 : index
    %c0_2 = arith.constant 0 : index
    %1 = vector.load %arg2[%c0_1, %c0_2] : memref<8x16xf32, #tpu.memory_space<vmem>>, vector<8x16xf32>
    %c0_3 = arith.constant 0 : index
    %c0_4 = arith.constant 0 : index
    %2 = vector.load %arg0[%c0_3, %c0_4] : memref<16x128xf32, #tpu.memory_space<vmem>>, vector<16x128xf32>
    %3 = tpu.iota {dimensions = array<i32: 0>} : vector<16x128xi32>
    %c16_i32 = arith.constant 16 : i32
    %4 = vector.broadcast %c16_i32 : i32 to vector<16x128xi32>
    %5 = arith.cmpi slt, %3, %4 : vector<16x128xi32>
    %6 = arith.extui %5 : vector<16x128xi1> to vector<16x128xi32>
    %7 = arith.sitofp %6 : vector<16x128xi32> to vector<16x128xf32>
    %cst = arith.constant 0.000000e+00 : f32
    %8 = vector.broadcast %cst : f32 to vector<8x128xf32>
    %cst_5 = arith.constant dense<0.000000e+00> : vector<16x128xf32>
    %9 = tpu.matmul %0, %2, %cst_5 {dimension_numbers = #tpu.dot_dimension_numbers<[1], [0], [0], [1], [0, 0, 1, 1], [], []>} : vector<16x16xf32>, vector<16x128xf32>, vector<16x128xf32> -> vector<16x128xf32>
    %10 = arith.addf %2, %9 : vector<16x128xf32>
    %c0_6 = arith.constant 0 : index
    %c0_7 = arith.constant 0 : index
    %c0_8 = arith.constant 0 : index
    %11 = vector.load %arg3[%c0_6, %c0_7, %c0_8] : memref<3x128x128xf32, #tpu.memory_space<vmem>>, vector<1x128x128xf32>
    %12 = vector.shape_cast %11 : vector<1x128x128xf32> to vector<128x128xf32>
    %cst_9 = arith.constant dense<0.000000e+00> : vector<16x128xf32>
    %13 = tpu.matmul %10, %12, %cst_9 {dimension_numbers = #tpu.dot_dimension_numbers<[1], [0], [0], [1], [0, 0, 1, 1], [], []>} : vector<16x128xf32>, vector<128x128xf32>, vector<16x128xf32> -> vector<16x128xf32>
    %c0_10 = arith.constant 0 : index
    %c0_11 = arith.constant 0 : index
    %c0_12 = arith.constant 0 : index
    %14 = vector.load %arg4[%c0_10, %c0_11, %c0_12] : memref<3x1x128xf32, #tpu.memory_space<vmem>>, vector<1x1x128xf32>
    %15 = vector.shape_cast %14 : vector<1x1x128xf32> to vector<1x128xf32>
    %16 = vector.broadcast %15 : vector<1x128xf32> to vector<16x128xf32>
    %17 = arith.addf %13, %16 : vector<16x128xf32>
    %cst_13 = arith.constant 0.000000e+00 : f32
    %18 = vector.broadcast %cst_13 : f32 to vector<16x128xf32>
    %19 = arith.maximumf %17, %18 : vector<16x128xf32>
    %c0_14 = arith.constant 0 : index
    %c0_15 = arith.constant 0 : index
    %c0_16 = arith.constant 0 : index
    %20 = vector.load %arg5[%c0_14, %c0_15, %c0_16] : memref<3x128x128xf32, #tpu.memory_space<vmem>>, vector<1x128x128xf32>
    %21 = vector.shape_cast %20 : vector<1x128x128xf32> to vector<128x128xf32>
    %cst_17 = arith.constant dense<0.000000e+00> : vector<16x128xf32>
    %22 = tpu.matmul %19, %21, %cst_17 {dimension_numbers = #tpu.dot_dimension_numbers<[1], [0], [0], [1], [0, 0, 1, 1], [], []>} : vector<16x128xf32>, vector<128x128xf32>, vector<16x128xf32> -> vector<16x128xf32>
    %c0_18 = arith.constant 0 : index
    %c0_19 = arith.constant 0 : index
    %c0_20 = arith.constant 0 : index
    %23 = vector.load %arg6[%c0_18, %c0_19, %c0_20] : memref<3x1x128xf32, #tpu.memory_space<vmem>>, vector<1x1x128xf32>
    %24 = vector.shape_cast %23 : vector<1x1x128xf32> to vector<1x128xf32>
    %25 = vector.broadcast %24 : vector<1x128xf32> to vector<16x128xf32>
    %26 = arith.addf %22, %25 : vector<16x128xf32>
    %cst_21 = arith.constant 0.000000e+00 : f32
    %27 = vector.broadcast %cst_21 : f32 to vector<16x128xf32>
    %28 = arith.maximumf %26, %27 : vector<16x128xf32>
    %29 = arith.mulf %28, %7 : vector<16x128xf32>
    %cst_22 = arith.constant dense<0.000000e+00> : vector<128xf32>
    %30 = vector.multi_reduction <add>, %29, %cst_22 [0] : vector<16x128xf32> to vector<128xf32>
    %31 = vector.shape_cast %30 : vector<128xf32> to vector<1x128xf32>
    %cst_23 = arith.constant 6.250000e-02 : f32
    %32 = vector.broadcast %cst_23 : f32 to vector<1x128xf32>
    %33 = arith.mulf %31, %32 : vector<1x128xf32>
    %34 = arith.mulf %29, %29 : vector<16x128xf32>
    %cst_24 = arith.constant dense<0.000000e+00> : vector<128xf32>
    %35 = vector.multi_reduction <add>, %34, %cst_24 [0] : vector<16x128xf32> to vector<128xf32>
    %36 = vector.shape_cast %35 : vector<128xf32> to vector<1x128xf32>
    %cst_25 = arith.constant 6.250000e-02 : f32
    %37 = vector.broadcast %cst_25 : f32 to vector<1x128xf32>
    %38 = arith.mulf %36, %37 : vector<1x128xf32>
    %39 = arith.mulf %33, %33 : vector<1x128xf32>
    %40 = arith.subf %38, %39 : vector<1x128xf32>
    %cst_26 = arith.constant 0.000000e+00 : f32
    %41 = vector.broadcast %cst_26 : f32 to vector<1x128xf32>
    %42 = arith.maximumf %40, %41 : vector<1x128xf32>
    %43 = vector.broadcast %33 : vector<1x128xf32> to vector<16x128xf32>
    %44 = arith.subf %28, %43 : vector<16x128xf32>
    %cst_27 = arith.constant 9.99999974E-6 : f32
    %45 = vector.broadcast %cst_27 : f32 to vector<1x128xf32>
    %46 = arith.addf %42, %45 : vector<1x128xf32>
    %47 = math.rsqrt %46 : vector<1x128xf32>
    %48 = vector.broadcast %47 : vector<1x128xf32> to vector<16x128xf32>
    %49 = arith.mulf %44, %48 : vector<16x128xf32>
    %50 = arith.mulf %49, %7 : vector<16x128xf32>
    %cst_28 = arith.constant dense<0.000000e+00> : vector<8x128xf32>
    %51 = tpu.matmul %1, %50, %cst_28 {dimension_numbers = #tpu.dot_dimension_numbers<[1], [0], [0], [1], [0, 0, 1, 1], [], []>} : vector<8x16xf32>, vector<16x128xf32>, vector<8x128xf32> -> vector<8x128xf32>
    %c0_29 = arith.constant 0 : index
    %c0_30 = arith.constant 0 : index
    %c0_31 = arith.constant 0 : index
    %52 = vector.load %arg7[%c0_29, %c0_30, %c0_31] : memref<3x128x128xf32, #tpu.memory_space<vmem>>, vector<1x128x128xf32>
    %53 = vector.shape_cast %52 : vector<1x128x128xf32> to vector<128x128xf32>
    %cst_32 = arith.constant dense<0.000000e+00> : vector<8x128xf32>
    %54 = tpu.matmul %51, %53, %cst_32 {dimension_numbers = #tpu.dot_dimension_numbers<[1], [0], [0], [1], [0, 0, 1, 1], [], []>} : vector<8x128xf32>, vector<128x128xf32>, vector<8x128xf32> -> vector<8x128xf32>
    %55 = arith.addf %8, %54 : vector<8x128xf32>
    %cst_33 = arith.constant dense<0.000000e+00> : vector<16x128xf32>
    %56 = tpu.matmul %0, %50, %cst_33 {dimension_numbers = #tpu.dot_dimension_numbers<[1], [0], [0], [1], [0, 0, 1, 1], [], []>} : vector<16x16xf32>, vector<16x128xf32>, vector<16x128xf32> -> vector<16x128xf32>
    %57 = arith.addf %50, %56 : vector<16x128xf32>
    %c1 = arith.constant 1 : index
    %c0_34 = arith.constant 0 : index
    %c0_35 = arith.constant 0 : index
    %58 = vector.load %arg3[%c1, %c0_34, %c0_35] : memref<3x128x128xf32, #tpu.memory_space<vmem>>, vector<1x128x128xf32>
    %59 = vector.shape_cast %58 : vector<1x128x128xf32> to vector<128x128xf32>
    %cst_36 = arith.constant dense<0.000000e+00> : vector<16x128xf32>
    %60 = tpu.matmul %57, %59, %cst_36 {dimension_numbers = #tpu.dot_dimension_numbers<[1], [0], [0], [1], [0, 0, 1, 1], [], []>} : vector<16x128xf32>, vector<128x128xf32>, vector<16x128xf32> -> vector<16x128xf32>
    %c1_37 = arith.constant 1 : index
    %c0_38 = arith.constant 0 : index
    %c0_39 = arith.constant 0 : index
    %61 = vector.load %arg4[%c1_37, %c0_38, %c0_39] : memref<3x1x128xf32, #tpu.memory_space<vmem>>, vector<1x1x128xf32>
    %62 = vector.shape_cast %61 : vector<1x1x128xf32> to vector<1x128xf32>
    %63 = vector.broadcast %62 : vector<1x128xf32> to vector<16x128xf32>
    %64 = arith.addf %60, %63 : vector<16x128xf32>
    %cst_40 = arith.constant 0.000000e+00 : f32
    %65 = vector.broadcast %cst_40 : f32 to vector<16x128xf32>
    %66 = arith.maximumf %64, %65 : vector<16x128xf32>
    %c1_41 = arith.constant 1 : index
    %c0_42 = arith.constant 0 : index
    %c0_43 = arith.constant 0 : index
    %67 = vector.load %arg5[%c1_41, %c0_42, %c0_43] : memref<3x128x128xf32, #tpu.memory_space<vmem>>, vector<1x128x128xf32>
    %68 = vector.shape_cast %67 : vector<1x128x128xf32> to vector<128x128xf32>
    %cst_44 = arith.constant dense<0.000000e+00> : vector<16x128xf32>
    %69 = tpu.matmul %66, %68, %cst_44 {dimension_numbers = #tpu.dot_dimension_numbers<[1], [0], [0], [1], [0, 0, 1, 1], [], []>} : vector<16x128xf32>, vector<128x128xf32>, vector<16x128xf32> -> vector<16x128xf32>
    %c1_45 = arith.constant 1 : index
    %c0_46 = arith.constant 0 : index
    %c0_47 = arith.constant 0 : index
    %70 = vector.load %arg6[%c1_45, %c0_46, %c0_47] : memref<3x1x128xf32, #tpu.memory_space<vmem>>, vector<1x1x128xf32>
    %71 = vector.shape_cast %70 : vector<1x1x128xf32> to vector<1x128xf32>
    %72 = vector.broadcast %71 : vector<1x128xf32> to vector<16x128xf32>
    %73 = arith.addf %69, %72 : vector<16x128xf32>
    %cst_48 = arith.constant 0.000000e+00 : f32
    %74 = vector.broadcast %cst_48 : f32 to vector<16x128xf32>
    %75 = arith.maximumf %73, %74 : vector<16x128xf32>
    %76 = arith.mulf %75, %7 : vector<16x128xf32>
    %cst_49 = arith.constant dense<0.000000e+00> : vector<128xf32>
    %77 = vector.multi_reduction <add>, %76, %cst_49 [0] : vector<16x128xf32> to vector<128xf32>
    %78 = vector.shape_cast %77 : vector<128xf32> to vector<1x128xf32>
    %cst_50 = arith.constant 6.250000e-02 : f32
    %79 = vector.broadcast %cst_50 : f32 to vector<1x128xf32>
    %80 = arith.mulf %78, %79 : vector<1x128xf32>
    %81 = arith.mulf %76, %76 : vector<16x128xf32>
    %cst_51 = arith.constant dense<0.000000e+00> : vector<128xf32>
    %82 = vector.multi_reduction <add>, %81, %cst_51 [0] : vector<16x128xf32> to vector<128xf32>
    %83 = vector.shape_cast %82 : vector<128xf32> to vector<1x128xf32>
    %cst_52 = arith.constant 6.250000e-02 : f32
    %84 = vector.broadcast %cst_52 : f32 to vector<1x128xf32>
    %85 = arith.mulf %83, %84 : vector<1x128xf32>
    %86 = arith.mulf %80, %80 : vector<1x128xf32>
    %87 = arith.subf %85, %86 : vector<1x128xf32>
    %cst_53 = arith.constant 0.000000e+00 : f32
    %88 = vector.broadcast %cst_53 : f32 to vector<1x128xf32>
    %89 = arith.maximumf %87, %88 : vector<1x128xf32>
    %90 = vector.broadcast %80 : vector<1x128xf32> to vector<16x128xf32>
    %91 = arith.subf %75, %90 : vector<16x128xf32>
    %cst_54 = arith.constant 9.99999974E-6 : f32
    %92 = vector.broadcast %cst_54 : f32 to vector<1x128xf32>
    %93 = arith.addf %89, %92 : vector<1x128xf32>
    %94 = math.rsqrt %93 : vector<1x128xf32>
    %95 = vector.broadcast %94 : vector<1x128xf32> to vector<16x128xf32>
    %96 = arith.mulf %91, %95 : vector<16x128xf32>
    %97 = arith.mulf %96, %7 : vector<16x128xf32>
    %cst_55 = arith.constant dense<0.000000e+00> : vector<8x128xf32>
    %98 = tpu.matmul %1, %97, %cst_55 {dimension_numbers = #tpu.dot_dimension_numbers<[1], [0], [0], [1], [0, 0, 1, 1], [], []>} : vector<8x16xf32>, vector<16x128xf32>, vector<8x128xf32> -> vector<8x128xf32>
    %c1_56 = arith.constant 1 : index
    %c0_57 = arith.constant 0 : index
    %c0_58 = arith.constant 0 : index
    %99 = vector.load %arg7[%c1_56, %c0_57, %c0_58] : memref<3x128x128xf32, #tpu.memory_space<vmem>>, vector<1x128x128xf32>
    %100 = vector.shape_cast %99 : vector<1x128x128xf32> to vector<128x128xf32>
    %cst_59 = arith.constant dense<0.000000e+00> : vector<8x128xf32>
    %101 = tpu.matmul %98, %100, %cst_59 {dimension_numbers = #tpu.dot_dimension_numbers<[1], [0], [0], [1], [0, 0, 1, 1], [], []>} : vector<8x128xf32>, vector<128x128xf32>, vector<8x128xf32> -> vector<8x128xf32>
    %102 = arith.addf %55, %101 : vector<8x128xf32>
    %cst_60 = arith.constant dense<0.000000e+00> : vector<16x128xf32>
    %103 = tpu.matmul %0, %97, %cst_60 {dimension_numbers = #tpu.dot_dimension_numbers<[1], [0], [0], [1], [0, 0, 1, 1], [], []>} : vector<16x16xf32>, vector<16x128xf32>, vector<16x128xf32> -> vector<16x128xf32>
    %104 = arith.addf %97, %103 : vector<16x128xf32>
    %c2 = arith.constant 2 : index
    %c0_61 = arith.constant 0 : index
    %c0_62 = arith.constant 0 : index
    %105 = vector.load %arg3[%c2, %c0_61, %c0_62] : memref<3x128x128xf32, #tpu.memory_space<vmem>>, vector<1x128x128xf32>
    %106 = vector.shape_cast %105 : vector<1x128x128xf32> to vector<128x128xf32>
    %cst_63 = arith.constant dense<0.000000e+00> : vector<16x128xf32>
    %107 = tpu.matmul %104, %106, %cst_63 {dimension_numbers = #tpu.dot_dimension_numbers<[1], [0], [0], [1], [0, 0, 1, 1], [], []>} : vector<16x128xf32>, vector<128x128xf32>, vector<16x128xf32> -> vector<16x128xf32>
    %c2_64 = arith.constant 2 : index
    %c0_65 = arith.constant 0 : index
    %c0_66 = arith.constant 0 : index
    %108 = vector.load %arg4[%c2_64, %c0_65, %c0_66] : memref<3x1x128xf32, #tpu.memory_space<vmem>>, vector<1x1x128xf32>
    %109 = vector.shape_cast %108 : vector<1x1x128xf32> to vector<1x128xf32>
    %110 = vector.broadcast %109 : vector<1x128xf32> to vector<16x128xf32>
    %111 = arith.addf %107, %110 : vector<16x128xf32>
    %cst_67 = arith.constant 0.000000e+00 : f32
    %112 = vector.broadcast %cst_67 : f32 to vector<16x128xf32>
    %113 = arith.maximumf %111, %112 : vector<16x128xf32>
    %c2_68 = arith.constant 2 : index
    %c0_69 = arith.constant 0 : index
    %c0_70 = arith.constant 0 : index
    %114 = vector.load %arg5[%c2_68, %c0_69, %c0_70] : memref<3x128x128xf32, #tpu.memory_space<vmem>>, vector<1x128x128xf32>
    %115 = vector.shape_cast %114 : vector<1x128x128xf32> to vector<128x128xf32>
    %cst_71 = arith.constant dense<0.000000e+00> : vector<16x128xf32>
    %116 = tpu.matmul %113, %115, %cst_71 {dimension_numbers = #tpu.dot_dimension_numbers<[1], [0], [0], [1], [0, 0, 1, 1], [], []>} : vector<16x128xf32>, vector<128x128xf32>, vector<16x128xf32> -> vector<16x128xf32>
    %c2_72 = arith.constant 2 : index
    %c0_73 = arith.constant 0 : index
    %c0_74 = arith.constant 0 : index
    %117 = vector.load %arg6[%c2_72, %c0_73, %c0_74] : memref<3x1x128xf32, #tpu.memory_space<vmem>>, vector<1x1x128xf32>
    %118 = vector.shape_cast %117 : vector<1x1x128xf32> to vector<1x128xf32>
    %119 = vector.broadcast %118 : vector<1x128xf32> to vector<16x128xf32>
    %120 = arith.addf %116, %119 : vector<16x128xf32>
    %cst_75 = arith.constant 0.000000e+00 : f32
    %121 = vector.broadcast %cst_75 : f32 to vector<16x128xf32>
    %122 = arith.maximumf %120, %121 : vector<16x128xf32>
    %123 = arith.mulf %122, %7 : vector<16x128xf32>
    %cst_76 = arith.constant dense<0.000000e+00> : vector<128xf32>
    %124 = vector.multi_reduction <add>, %123, %cst_76 [0] : vector<16x128xf32> to vector<128xf32>
    %125 = vector.shape_cast %124 : vector<128xf32> to vector<1x128xf32>
    %cst_77 = arith.constant 6.250000e-02 : f32
    %126 = vector.broadcast %cst_77 : f32 to vector<1x128xf32>
    %127 = arith.mulf %125, %126 : vector<1x128xf32>
    %128 = arith.mulf %123, %123 : vector<16x128xf32>
    %cst_78 = arith.constant dense<0.000000e+00> : vector<128xf32>
    %129 = vector.multi_reduction <add>, %128, %cst_78 [0] : vector<16x128xf32> to vector<128xf32>
    %130 = vector.shape_cast %129 : vector<128xf32> to vector<1x128xf32>
    %cst_79 = arith.constant 6.250000e-02 : f32
    %131 = vector.broadcast %cst_79 : f32 to vector<1x128xf32>
    %132 = arith.mulf %130, %131 : vector<1x128xf32>
    %133 = arith.mulf %127, %127 : vector<1x128xf32>
    %134 = arith.subf %132, %133 : vector<1x128xf32>
    %cst_80 = arith.constant 0.000000e+00 : f32
    %135 = vector.broadcast %cst_80 : f32 to vector<1x128xf32>
    %136 = arith.maximumf %134, %135 : vector<1x128xf32>
    %137 = vector.broadcast %127 : vector<1x128xf32> to vector<16x128xf32>
    %138 = arith.subf %122, %137 : vector<16x128xf32>
    %cst_81 = arith.constant 9.99999974E-6 : f32
    %139 = vector.broadcast %cst_81 : f32 to vector<1x128xf32>
    %140 = arith.addf %136, %139 : vector<1x128xf32>
    %141 = math.rsqrt %140 : vector<1x128xf32>
    %142 = vector.broadcast %141 : vector<1x128xf32> to vector<16x128xf32>
    %143 = arith.mulf %138, %142 : vector<16x128xf32>
    %144 = arith.mulf %143, %7 : vector<16x128xf32>
    %cst_82 = arith.constant dense<0.000000e+00> : vector<8x128xf32>
    %145 = tpu.matmul %1, %144, %cst_82 {dimension_numbers = #tpu.dot_dimension_numbers<[1], [0], [0], [1], [0, 0, 1, 1], [], []>} : vector<8x16xf32>, vector<16x128xf32>, vector<8x128xf32> -> vector<8x128xf32>
    %c2_83 = arith.constant 2 : index
    %c0_84 = arith.constant 0 : index
    %c0_85 = arith.constant 0 : index
    %146 = vector.load %arg7[%c2_83, %c0_84, %c0_85] : memref<3x128x128xf32, #tpu.memory_space<vmem>>, vector<1x128x128xf32>
    %147 = vector.shape_cast %146 : vector<1x128x128xf32> to vector<128x128xf32>
    %cst_86 = arith.constant dense<0.000000e+00> : vector<8x128xf32>
    %148 = tpu.matmul %145, %147, %cst_86 {dimension_numbers = #tpu.dot_dimension_numbers<[1], [0], [0], [1], [0, 0, 1, 1], [], []>} : vector<8x128xf32>, vector<128x128xf32>, vector<8x128xf32> -> vector<8x128xf32>
    %149 = arith.addf %102, %148 : vector<8x128xf32>
    %c0_87 = arith.constant 0 : index
    %c0_88 = arith.constant 0 : index
    %150 = vector.load %arg8[%c0_87, %c0_88] : memref<1x128xf32, #tpu.memory_space<vmem>>, vector<1x128xf32>
    %151 = vector.broadcast %150 : vector<1x128xf32> to vector<8x128xf32>
    %152 = arith.addf %149, %151 : vector<8x128xf32>
    %cst_89 = arith.constant 0.000000e+00 : f32
    %153 = vector.broadcast %cst_89 : f32 to vector<8x128xf32>
    %154 = arith.maximumf %152, %153 : vector<8x128xf32>
    %c0_90 = arith.constant 0 : index
    %c0_91 = arith.constant 0 : index
    %155 = vector.load %arg9[%c0_90, %c0_91] : memref<128x128xf32, #tpu.memory_space<vmem>>, vector<128x128xf32>
    %cst_92 = arith.constant dense<0.000000e+00> : vector<8x128xf32>
    %156 = tpu.matmul %154, %155, %cst_92 {dimension_numbers = #tpu.dot_dimension_numbers<[1], [0], [0], [1], [0, 0, 1, 1], [], []>} : vector<8x128xf32>, vector<128x128xf32>, vector<8x128xf32> -> vector<8x128xf32>
    %c0_93 = arith.constant 0 : index
    %c0_94 = arith.constant 0 : index
    %157 = vector.load %arg10[%c0_93, %c0_94] : memref<1x128xf32, #tpu.memory_space<vmem>>, vector<1x128xf32>
    %158 = vector.broadcast %157 : vector<1x128xf32> to vector<8x128xf32>
    %159 = arith.addf %156, %158 : vector<8x128xf32>
    %c0_95 = arith.constant 0 : index
    %c0_96 = arith.constant 0 : index
    %160 = vector.load %arg11[%c0_95, %c0_96] : memref<8x128xf32, #tpu.memory_space<vmem>>, vector<8x128xf32>
    tpu.vector_store %arg11[%c0_95, %c0_96], %159 {strides = array<i32>} : memref<8x128xf32, #tpu.memory_space<vmem>>, vector<8x128xf32>,
    return
  }
}

</mosaic_0001>

<llo_original>
// kernel: simclr_forward.1
$region0: #{simclr_forward.1}
  #allocation0 [shape = 'u32[]', space=smem, size = 0x4, offset = 0x4, fixed_abs, tag = 'smem constant byte address 0x4 - core index']
  #allocation1 [shape = 'u32[72,128]{1,0:T(1,128)}', space=vmem, size = 0x9000, scoped, tag = 'internal scratch']
  %s0 = inlined_call_operand.vmem [shape: f32[16,128], index: 0, kind: input, shape index: {}]
  %s1 = inlined_call_operand.vmem [shape: f32[16,16], index: 1, kind: input, shape index: {}]
  %s2 = inlined_call_operand.vmem [shape: f32[8,16], index: 2, kind: input, shape index: {}]
  %s3 = inlined_call_operand.vmem [shape: f32[3,128,128], index: 3, kind: input, shape index: {}]
  %s4 = inlined_call_operand.vmem [shape: f32[3,1,128], index: 4, kind: input, shape index: {}]
  %s5 = inlined_call_operand.vmem [shape: f32[3,128,128], index: 5, kind: input, shape index: {}]
  %s6 = inlined_call_operand.vmem [shape: f32[3,1,128], index: 6, kind: input, shape index: {}]
  %s7 = inlined_call_operand.vmem [shape: f32[3,128,128], index: 7, kind: input, shape index: {}]
  %s8 = inlined_call_operand.vmem [shape: f32[1,128], index: 8, kind: input, shape index: {}]
  %s9 = inlined_call_operand.vmem [shape: f32[128,128], index: 9, kind: input, shape index: {}]
  %s10 = inlined_call_operand.vmem [shape: f32[1,128], index: 10, kind: input, shape index: {}]
  %s11 = inlined_call_operand.vmem [shape: f32[8,128], index: 11, kind: output, shape index: {}]
  %s12 = sld [smem:[#allocation0]]
  $region54: #{simclr_forward.1} parent=0
    _
  %s14 = ssub.s32 1, %s12
  %s15 = scalar_select 0, %s14, %s12
  // Predicated region
  $region2: #{simclr_forward.1} parent=0 // pred_check
    _
  $region3: #{simclr_forward.1} parent=0 // pred_check_branch
    %17 = sbr.rel (0) target = $region5
  $region4: #{simclr_forward.1} parent=0 // pred_region
    _
  $region5: #{simclr_forward.1} parent=0 // pred_fallthru
    _
  // Predicated region
  $region6: #{simclr_forward.1} parent=0 // pred_check
    _
  $region7: #{simclr_forward.1} parent=0 // pred_check_branch
    %19 = sbr.rel (0) target = $region9
  $region8: #{simclr_forward.1} parent=0 // pred_region
    _
  $region9: #{simclr_forward.1} parent=0 // pred_fallthru
    _
  // Predicated region
  $region10: #{simclr_forward.1} parent=0 // pred_check
    _
  $region11: #{simclr_forward.1} parent=0 // pred_check_branch
    %21 = sbr.rel (0) target = $region13
  $region12: #{simclr_forward.1} parent=0 // pred_region
    _
  $region13: #{simclr_forward.1} parent=0 // pred_fallthru
    _
  // Predicated region
  $region14: #{simclr_forward.1} parent=0 // pred_check
    _
  $region15: #{simclr_forward.1} parent=0 // pred_check_branch
    %23 = sbr.rel (0) target = $region17
  $region16: #{simclr_forward.1} parent=0 // pred_region
    _
  $region17: #{simclr_forward.1} parent=0 // pred_fallthru
    _
  // Predicated region
  $region18: #{simclr_forward.1} parent=0 // pred_check
    _
  $region19: #{simclr_forward.1} parent=0 // pred_check_branch
    %25 = sbr.rel (0) target = $region21
  $region20: #{simclr_forward.1} parent=0 // pred_region
    _
  $region21: #{simclr_forward.1} parent=0 // pred_fallthru
    _
  // Predicated region
  $region22: #{simclr_forward.1} parent=0 // pred_check
    _
  $region23: #{simclr_forward.1} parent=0 // pred_check_branch
    %27 = sbr.rel (0) target = $region25
  $region24: #{simclr_forward.1} parent=0 // pred_region
    _
  $region25: #{simclr_forward.1} parent=0 // pred_fallthru
    _
  // Predicated region
  $region26: #{simclr_forward.1} parent=0 // pred_check
    _
  $region27: #{simclr_forward.1} parent=0 // pred_check_branch
    %29 = sbr.rel (0) target = $region29
  $region28: #{simclr_forward.1} parent=0 // pred_region
    _
  $region29: #{simclr_forward.1} parent=0 // pred_fallthru
    _
  // Predicated region
  $region30: #{simclr_forward.1} parent=0 // pred_check
    _
  $region31: #{simclr_forward.1} parent=0 // pred_check_branch
    %31 = sbr.rel (0) target = $region33
  $region32: #{simclr_forward.1} parent=0 // pred_region
    _
  $region33: #{simclr_forward.1} parent=0 // pred_fallthru
    _
  // Predicated region
  $region34: #{simclr_forward.1} parent=0 // pred_check
    _
  $region35: #{simclr_forward.1} parent=0 // pred_check_branch
    %33 = sbr.rel (0) target = $region37
  $region36: #{simclr_forward.1} parent=0 // pred_region
    _
  $region37: #{simclr_forward.1} parent=0 // pred_fallthru
    _
  // Predicated region
  $region38: #{simclr_forward.1} parent=0 // pred_check
    _
  $region39: #{simclr_forward.1} parent=0 // pred_check_branch
    %35 = sbr.rel (0) target = $region41
  $region40: #{simclr_forward.1} parent=0 // pred_region
    _
  $region41: #{simclr_forward.1} parent=0 // pred_fallthru
    _
  // Predicated region
  $region42: #{simclr_forward.1} parent=0 // pred_check
    _
  $region43: #{simclr_forward.1} parent=0 // pred_check_branch
    %37 = sbr.rel (0) target = $region45
  $region44: #{simclr_forward.1} parent=0 // pred_region
    _
  $region45: #{simclr_forward.1} parent=0 // pred_fallthru
    _
  %v38 = vld [vmem:[%s1] sm:$0xff]
  %v39 = vld [vmem:[%s1 + $0x8] sm:$0xff]
  %v40 = vld [vmem:[%s2] sm:$0xff]
  %v41 = vld [vmem:[%s0] sm:$0xff]
  %v42 = vld [vmem:[%s0 + $0x8] sm:$0xff]
  %v43 = vlaneseq
  %v44 = vshrl.u32 %v43, 7
  %v45 = vadd.s32 %v44, 8
  %vm46 = vcmp.lt.s32.totalorder %v44, 16
  %vm47 = vcmp.lt.s32.totalorder %v45, 16
  %v48 = vsel %vm46, 1, 0
  %v49 = vsel %vm47, 1, 0
  %v50 = vcvt.s32.f32 %v48
  %v51 = vcvt.s32.f32 %v49
  %vm52 = vcmask 130048
  %v54 = vsel %vm52, %v38, 0
  %v57 = vsel %vm52, %v39, 0
  %59 = vmatpush.msra.mxu0 0.0
  %60 = vmatpush.msra.mxu0 0.0
  %61 = vmatpush.msra.mxu0 0.0
  %62 = vmatpush.msra.mxu0 0.0
  %63 = vmatpush.msra.mxu0 0.0
  %64 = vmatpush.msra.mxu0 0.0
  %65 = vmatpush.msra.mxu0 0.0
  %66 = vmatpush.msra.mxu0 0.0
  %67 = vmatpush.msra.mxu0 0.0
  %68 = vmatpush.msra.mxu0 0.0
  %69 = vmatpush.msra.mxu0 0.0
  %70 = vmatpush.msra.mxu0 0.0
  %71 = vmatpush.msra.mxu0 0.0
  %72 = vmatpush.msra.mxu0 0.0
  %73 = vmatpush.msra.mxu0 %v42
  %74 = vmatpush.msra.mxu0 %v41
  %75 = vmatmul.f32.gmra.mxu0 %v54
  %v76 = vpop.f32.mrf.mxu0
  %v77 = vadd.f32 0.0, %v76
  %78 = vmatmul.f32.gmra.mxu0 %v57
  %v79 = vpop.f32.mrf.mxu0
  %v80 = vadd.f32 0.0, %v79
  %81 = vdwg.mxu0
  %v82 = vadd.f32 %v41, %v77
  %v83 = vadd.f32 %v42, %v80
  %v84 = vld [vmem:[%s3] sm:$0xff]
  %v85 = vld [vmem:[%s3 + $0x8] sm:$0xff]
  %v86 = vld [vmem:[%s3 + $0x10] sm:$0xff]
  %v87 = vld [vmem:[%s3 + $0x18] sm:$0xff]
  %v88 = vld [vmem:[%s3 + $0x20] sm:$0xff]
  %v89 = vld [vmem:[%s3 + $0x28] sm:$0xff]
  %v90 = vld [vmem:[%s3 + $0x30] sm:$0xff]
  %v91 = vld [vmem:[%s3 + $0x38] sm:$0xff]
  %v92 = vld [vmem:[%s3 + $0x40] sm:$0xff]
  %v93 = vld [vmem:[%s3 + $0x48] sm:$0xff]
  %v94 = vld [vmem:[%s3 + $0x50] sm:$0xff]
  %v95 = vld [vmem:[%s3 + $0x58] sm:$0xff]
  %v96 = vld [vmem:[%s3 + $0x60] sm:$0xff]
  %v97 = vld [vmem:[%s3 + $0x68] sm:$0xff]
  %v98 = vld [vmem:[%s3 + $0x70] sm:$0xff]
  %v99 = vld [vmem:[%s3 + $0x78] sm:$0xff]
  %v100 = vld [vmem:[%s4] sm:$0x1]
  %v102 = vperm.slane %v100, 0
  %104 = vmatpush.msra.mxu0 %v99
  %105 = vmatpush.msra.mxu0 %v98
  %106 = vmatpush.msra.mxu0 %v97
  %107 = vmatpush.msra.mxu0 %v96
  %108 = vmatpush.msra.mxu0 %v95
  %109 = vmatpush.msra.mxu0 %v94
  %110 = vmatpush.msra.mxu0 %v93
  %111 = vmatpush.msra.mxu0 %v92
  %112 = vmatpush.msra.mxu0 %v91
  %113 = vmatpush.msra.mxu0 %v90
  %114 = vmatpush.msra.mxu0 %v89
  %115 = vmatpush.msra.mxu0 %v88
  %116 = vmatpush.msra.mxu0 %v87
  %117 = vmatpush.msra.mxu0 %v86
  %118 = vmatpush.msra.mxu0 %v85
  %119 = vmatpush.msra.mxu0 %v84
  %120 = vmatmul.f32.gmra.mxu0 %v82
  %v121 = vpop.f32.mrf.mxu0
  %v122 = vadd.f32 %v102, %v121
  %123 = vmatmul.f32.gmra.mxu0 %v83
  %v124 = vpop.f32.mrf.mxu0
  %v125 = vadd.f32 %v102, %v124
  %126 = vdwg.mxu0
  %v127 = vmax.f32 %v122, 0.0
  %v128 = vmax.f32 %v125, 0.0
  %v129 = vld [vmem:[%s5] sm:$0xff]
  %v130 = vld [vmem:[%s5 + $0x8] sm:$0xff]
  %v131 = vld [vmem:[%s5 + $0x10] sm:$0xff]
  %v132 = vld [vmem:[%s5 + $0x18] sm:$0xff]
  %v133 = vld [vmem:[%s5 + $0x20] sm:$0xff]
  %v134 = vld [vmem:[%s5 + $0x28] sm:$0xff]
  %v135 = vld [vmem:[%s5 + $0x30] sm:$0xff]
  %v136 = vld [vmem:[%s5 + $0x38] sm:$0xff]
  %v137 = vld [vmem:[%s5 + $0x40] sm:$0xff]
  %v138 = vld [vmem:[%s5 + $0x48] sm:$0xff]
  %v139 = vld [vmem:[%s5 + $0x50] sm:$0xff]
  %v140 = vld [vmem:[%s5 + $0x58] sm:$0xff]
  %v141 = vld [vmem:[%s5 + $0x60] sm:$0xff]
  %v142 = vld [vmem:[%s5 + $0x68] sm:$0xff]
  %v143 = vld [vmem:[%s5 + $0x70] sm:$0xff]
  %v144 = vld [vmem:[%s5 + $0x78] sm:$0xff]
  %v145 = vld [vmem:[%s6] sm:$0x1]
  %v147 = vperm.slane %v145, 0
  %149 = vmatpush.msra.mxu0 %v144
  %150 = vmatpush.msra.mxu0 %v143
  %151 = vmatpush.msra.mxu0 %v142
  %152 = vmatpush.msra.mxu0 %v141
  %153 = vmatpush.msra.mxu0 %v140
  %154 = vmatpush.msra.mxu0 %v139
  %155 = vmatpush.msra.mxu0 %v138
  %156 = vmatpush.msra.mxu0 %v137
  %157 = vmatpush.msra.mxu0 %v136
  %158 = vmatpush.msra.mxu0 %v135
  %159 = vmatpush.msra.mxu0 %v134
  %160 = vmatpush.msra.mxu0 %v133
  %161 = vmatpush.msra.mxu0 %v132
  %162 = vmatpush.msra.mxu0 %v131
  %163 = vmatpush.msra.mxu0 %v130
  %164 = vmatpush.msra.mxu0 %v129
  %165 = vmatmul.f32.gmra.mxu0 %v127
  %v166 = vpop.f32.mrf.mxu0
  %v167 = vadd.f32 %v147, %v166
  %168 = vmatmul.f32.gmra.mxu0 %v128
  %v169 = vpop.f32.mrf.mxu0
  %v170 = vadd.f32 %v147, %v169
  %171 = vdwg.mxu0
  %v172 = vmax.f32 %v167, 0.0
  %v173 = vmax.f32 %v170, 0.0
  %v174 = vmul.f32 %v172, %v50
  %v175 = vmul.f32 %v173, %v51
  %v176 = vadd.f32 %v174, %v175
  %v177 = vrot.slane %v176, 4
  %v178 = vadd.f32 %v176, %v177
  %v179 = vrot.slane %v178, 2
  %v180 = vadd.f32 %v178, %v179
  %v181 = vrot.slane %v180, 1
  %v182 = vadd.f32 %v180, %v181
  %v183 = vmul.f32 %v182, 0.0625
  %v184 = vmul.f32 %v174, %v174
  %v185 = vmul.f32 %v175, %v175
  %v186 = vadd.f32 %v184, %v185
  %v187 = vrot.slane %v186, 4
  %v188 = vadd.f32 %v186, %v187
  %v189 = vrot.slane %v188, 2
  %v190 = vadd.f32 %v188, %v189
  %v191 = vrot.slane %v190, 1
  %v192 = vadd.f32 %v190, %v191
  %v193 = vmul.f32 %v192, 0.0625
  %v194 = vmul.f32 %v183, %v183
  %v195 = vsub.f32 %v193, %v194
  %v196 = vmax.f32 %v195, 0.0
  %v197 = vsub.f32 %v172, %v183
  %v198 = vsub.f32 %v173, %v183
  %v199 = vadd.f32 %v196, 1e-05
  %v200 = vrsqrt.pop %v199
  %v201 = vmul.f32 %v200, %v199
  %v202 = vmul.f32 %v201, %v200
  %v203 = vmul.f32 0.5, %v202
  %v204 = vsub.f32 1.5, %v203
  %v205 = vmul.f32 %v200, %v204
  %vm206 = vweird.f32 %v199
  %vm207 = vweird.f32 %v200
  %vm208 = vmor %vm206, %vm207
  %v209 = vsel %vm208, %v200, %v205
  %v210 = vmul.f32 %v197, %v209
  %v211 = vmul.f32 %v198, %v209
  %v212 = vmul.f32 %v210, %v50
  %v213 = vmul.f32 %v211, %v51
  %v215 = vsel %vm52, %v40, 0
  %217 = vmatpush.msra.mxu0 0.0
  %218 = vmatpush.msra.mxu0 0.0
  %219 = vmatpush.msra.mxu0 0.0
  %220 = vmatpush.msra.mxu0 0.0
  %221 = vmatpush.msra.mxu0 0.0
  %222 = vmatpush.msra.mxu0 0.0
  %223 = vmatpush.msra.mxu0 0.0
  %224 = vmatpush.msra.mxu0 0.0
  %225 = vmatpush.msra.mxu0 0.0
  %226 = vmatpush.msra.mxu0 0.0
  %227 = vmatpush.msra.mxu0 0.0
  %228 = vmatpush.msra.mxu0 0.0
  %229 = vmatpush.msra.mxu0 0.0
  %230 = vmatpush.msra.mxu0 0.0
  %231 = vmatpush.msra.mxu0 %v213
  %232 = vmatpush.msra.mxu0 %v212
  %233 = vmatmul.f32.gmra.mxu0 %v215
  %v234 = vpop.f32.mrf.mxu0
  %v235 = vadd.f32 0.0, %v234
  %236 = vdwg.mxu0
  %v237 = vld [vmem:[%s7] sm:$0xff]
  %v238 = vld [vmem:[%s7 + $0x8] sm:$0xff]
  %v239 = vld [vmem:[%s7 + $0x10] sm:$0xff]
  %v240 = vld [vmem:[%s7 + $0x18] sm:$0xff]
  %v241 = vld [vmem:[%s7 + $0x20] sm:$0xff]
  %v242 = vld [vmem:[%s7 + $0x28] sm:$0xff]
  %v243 = vld [vmem:[%s7 + $0x30] sm:$0xff]
  %v244 = vld [vmem:[%s7 + $0x38] sm:$0xff]
  %v245 = vld [vmem:[%s7 + $0x40] sm:$0xff]
  %v246 = vld [vmem:[%s7 + $0x48] sm:$0xff]
  %v247 = vld [vmem:[%s7 + $0x50] sm:$0xff]
  %v248 = vld [vmem:[%s7 + $0x58] sm:$0xff]
  %v249 = vld [vmem:[%s7 + $0x60] sm:$0xff]
  %v250 = vld [vmem:[%s7 + $0x68] sm:$0xff]
  %v251 = vld [vmem:[%s7 + $0x70] sm:$0xff]
  %v252 = vld [vmem:[%s7 + $0x78] sm:$0xff]
  %253 = vmatpush.msra.mxu0 0.0
  %254 = vmatpush.msra.mxu0 0.0
  %255 = vmatpush.msra.mxu0 0.0
  %256 = vmatpush.msra.mxu0 0.0
  %257 = vmatpush.msra.mxu0 0.0
  %258 = vmatpush.msra.mxu0 0.0
  %259 = vmatpush.msra.mxu0 0.0
  %260 = vmatpush.msra.mxu0 0.0
  %261 = vmatpush.msra.mxu0 0.0
  %262 = vmatpush.msra.mxu0 0.0
  %263 = vmatpush.msra.mxu0 0.0
  %264 = vmatpush.msra.mxu0 0.0
  %265 = vmatpush.msra.mxu0 0.0
  %266 = vmatpush.msra.mxu0 0.0
  %267 = vmatpush.msra.mxu0 %v213
  %268 = vmatpush.msra.mxu0 %v212
  %269 = vmatmul.f32.gmra.mxu0 %v54
  %v270 = vpop.f32.mrf.mxu0
  %v271 = vadd.f32 0.0, %v270
  %272 = vmatmul.f32.gmra.mxu0 %v57
  %v273 = vpop.f32.mrf.mxu0
  %v274 = vadd.f32 0.0, %v273
  %275 = vdwg.mxu0
  %v276 = vadd.f32 %v212, %v271
  %v277 = vadd.f32 %v213, %v274
  %s278 = scalar_lea.vmem %s3, 128
  %v279 = vld [vmem:[%s278] sm:$0xff]
  %v280 = vld [vmem:[%s278 + $0x8] sm:$0xff]
  %v281 = vld [vmem:[%s278 + $0x10] sm:$0xff]
  %v282 = vld [vmem:[%s278 + $0x18] sm:$0xff]
  %v283 = vld [vmem:[%s278 + $0x20] sm:$0xff]
  %v284 = vld [vmem:[%s278 + $0x28] sm:$0xff]
  %v285 = vld [vmem:[%s278 + $0x30] sm:$0xff]
  %v286 = vld [vmem:[%s278 + $0x38] sm:$0xff]
  %v287 = vld [vmem:[%s278 + $0x40] sm:$0xff]
  %v288 = vld [vmem:[%s278 + $0x48] sm:$0xff]
  %v289 = vld [vmem:[%s278 + $0x50] sm:$0xff]
  %v290 = vld [vmem:[%s278 + $0x58] sm:$0xff]
  %v291 = vld [vmem:[%s278 + $0x60] sm:$0xff]
  %v292 = vld [vmem:[%s278 + $0x68] sm:$0xff]
  %v293 = vld [vmem:[%s278 + $0x70] sm:$0xff]
  %v294 = vld [vmem:[%s278 + $0x78] sm:$0xff]
  %s295 = scalar_lea.vmem %s4, 1
  %v296 = vld [vmem:[%s295] sm:$0x1]
  %v298 = vperm.slane %v296, 0
  %300 = vmatpush.msra.mxu0 %v294
  %301 = vmatpush.msra.mxu0 %v293
  %302 = vmatpush.msra.mxu0 %v292
  %303 = vmatpush.msra.mxu0 %v291
  %304 = vmatpush.msra.mxu0 %v290
  %305 = vmatpush.msra.mxu0 %v289
  %306 = vmatpush.msra.mxu0 %v288
  %307 = vmatpush.msra.mxu0 %v287
  %308 = vmatpush.msra.mxu0 %v286
  %309 = vmatpush.msra.mxu0 %v285
  %310 = vmatpush.msra.mxu0 %v284
  %311 = vmatpush.msra.mxu0 %v283
  %312 = vmatpush.msra.mxu0 %v282
  %313 = vmatpush.msra.mxu0 %v281
  %314 = vmatpush.msra.mxu0 %v280
  %315 = vmatpush.msra.mxu0 %v279
  %316 = vmatmul.f32.gmra.mxu0 %v276
  %v317 = vpop.f32.mrf.mxu0
  %v318 = vadd.f32 %v298, %v317
  %319 = vmatmul.f32.gmra.mxu0 %v277
  %v320 = vpop.f32.mrf.mxu0
  %v321 = vadd.f32 %v298, %v320
  %322 = vdwg.mxu0
  %v323 = vmax.f32 %v318, 0.0
  %v324 = vmax.f32 %v321, 0.0
  %s325 = scalar_lea.vmem %s5, 128
  %v326 = vld [vmem:[%s325] sm:$0xff]
  %v327 = vld [vmem:[%s325 + $0x8] sm:$0xff]
  %v328 = vld [vmem:[%s325 + $0x10] sm:$0xff]
  %v329 = vld [vmem:[%s325 + $0x18] sm:$0xff]
  %v330 = vld [vmem:[%s325 + $0x20] sm:$0xff]
  %v331 = vld [vmem:[%s325 + $0x28] sm:$0xff]
  %v332 = vld [vmem:[%s325 + $0x30] sm:$0xff]
  %v333 = vld [vmem:[%s325 + $0x38] sm:$0xff]
  %v334 = vld [vmem:[%s325 + $0x40] sm:$0xff]
  %v335 = vld [vmem:[%s325 + $0x48] sm:$0xff]
  %v336 = vld [vmem:[%s325 + $0x50] sm:$0xff]
  %v337 = vld [vmem:[%s325 + $0x58] sm:$0xff]
  %v338 = vld [vmem:[%s325 + $0x60] sm:$0xff]
  %v339 = vld [vmem:[%s325 + $0x68] sm:$0xff]
  %v340 = vld [vmem:[%s325 + $0x70] sm:$0xff]
  %v341 = vld [vmem:[%s325 + $0x78] sm:$0xff]
  %s342 = scalar_lea.vmem %s6, 1
  %v343 = vld [vmem:[%s342] sm:$0x1]
  %v345 = vperm.slane %v343, 0
  %347 = vmatpush.msra.mxu0 %v341
  %348 = vmatpush.msra.mxu0 %v340
  %349 = vmatpush.msra.mxu0 %v339
  %350 = vmatpush.msra.mxu0 %v338
  %351 = vmatpush.msra.mxu0 %v337
  %352 = vmatpush.msra.mxu0 %v336
  %353 = vmatpush.msra.mxu0 %v335
  %354 = vmatpush.msra.mxu0 %v334
  %355 = vmatpush.msra.mxu0 %v333
  %356 = vmatpush.msra.mxu0 %v332
  %357 = vmatpush.msra.mxu0 %v331
  %358 = vmatpush.msra.mxu0 %v330
  %359 = vmatpush.msra.mxu0 %v329
  %360 = vmatpush.msra.mxu0 %v328
  %361 = vmatpush.msra.mxu0 %v327
  %362 = vmatpush.msra.mxu0 %v326
  %363 = vmatmul.f32.gmra.mxu0 %v323
  %v364 = vpop.f32.mrf.mxu0
  %v365 = vadd.f32 %v345, %v364
  %366 = vmatmul.f32.gmra.mxu0 %v324
  %v367 = vpop.f32.mrf.mxu0
  %v368 = vadd.f32 %v345, %v367
  %369 = vdwg.mxu0
  %v370 = vmax.f32 %v365, 0.0
  %v371 = vmax.f32 %v368, 0.0
  %v372 = vmul.f32 %v370, %v50
  %v373 = vmul.f32 %v371, %v51
  %v374 = vadd.f32 %v372, %v373
  %v375 = vrot.slane %v374, 4
  %v376 = vadd.f32 %v374, %v375
  %v377 = vrot.slane %v376, 2
  %v378 = vadd.f32 %v376, %v377
  %v379 = vrot.slane %v378, 1
  %v380 = vadd.f32 %v378, %v379
  %v381 = vmul.f32 %v380, 0.0625
  %v382 = vmul.f32 %v372, %v372
  %v383 = vmul.f32 %v373, %v373
  %v384 = vadd.f32 %v382, %v383
  %v385 = vrot.slane %v384, 4
  %v386 = vadd.f32 %v384, %v385
  %v387 = vrot.slane %v386, 2
  %v388 = vadd.f32 %v386, %v387
  %v389 = vrot.slane %v388, 1
  %v390 = vadd.f32 %v388, %v389
  %v391 = vmul.f32 %v390, 0.0625
  %v392 = vmul.f32 %v381, %v381
  %v393 = vsub.f32 %v391, %v392
  %v394 = vmax.f32 %v393, 0.0
  %v395 = vsub.f32 %v370, %v381
  %v396 = vsub.f32 %v371, %v381
  %v397 = vadd.f32 %v394, 1e-05
  %v398 = vrsqrt.pop %v397
  %v399 = vmul.f32 %v398, %v397
  %v400 = vmul.f32 %v399, %v398
  %v401 = vmul.f32 0.5, %v400
  %v402 = vsub.f32 1.5, %v401
  %v403 = vmul.f32 %v398, %v402
  %vm404 = vweird.f32 %v397
  %vm405 = vweird.f32 %v398
  %vm406 = vmor %vm404, %vm405
  %v407 = vsel %vm406, %v398, %v403
  %v408 = vmul.f32 %v395, %v407
  %v409 = vmul.f32 %v396, %v407
  %v410 = vmul.f32 %v408, %v50
  %v411 = vmul.f32 %v409, %v51
  %412 = vmatpush.msra.mxu0 0.0
  %413 = vmatpush.msra.mxu0 0.0
  %414 = vmatpush.msra.mxu0 0.0
  %415 = vmatpush.msra.mxu0 0.0
  %416 = vmatpush.msra.mxu0 0.0
  %417 = vmatpush.msra.mxu0 0.0
  %418 = vmatpush.msra.mxu0 0.0
  %419 = vmatpush.msra.mxu0 0.0
  %420 = vmatpush.msra.mxu0 0.0
  %421 = vmatpush.msra.mxu0 0.0
  %422 = vmatpush.msra.mxu0 0.0
  %423 = vmatpush.msra.mxu0 0.0
  %424 = vmatpush.msra.mxu0 0.0
  %425 = vmatpush.msra.mxu0 0.0
  %426 = vmatpush.msra.mxu0 %v411
  %427 = vmatpush.msra.mxu0 %v410
  %428 = vmatmul.f32.gmra.mxu0 %v215
  %v429 = vpop.f32.mrf.mxu0
  %v430 = vadd.f32 0.0, %v429
  %431 = vdwg.mxu0
  %s432 = scalar_lea.vmem %s7, 128
  %v433 = vld [vmem:[%s432] sm:$0xff]
  %v434 = vld [vmem:[%s432 + $0x8] sm:$0xff]
  %v435 = vld [vmem:[%s432 + $0x10] sm:$0xff]
  %v436 = vld [vmem:[%s432 + $0x18] sm:$0xff]
  %v437 = vld [vmem:[%s432 + $0x20] sm:$0xff]
  %v438 = vld [vmem:[%s432 + $0x28] sm:$0xff]
  %v439 = vld [vmem:[%s432 + $0x30] sm:$0xff]
  %v440 = vld [vmem:[%s432 + $0x38] sm:$0xff]
  %v441 = vld [vmem:[%s432 + $0x40] sm:$0xff]
  %v442 = vld [vmem:[%s432 + $0x48] sm:$0xff]
  %v443 = vld [vmem:[%s432 + $0x50] sm:$0xff]
  %v444 = vld [vmem:[%s432 + $0x58] sm:$0xff]
  %v445 = vld [vmem:[%s432 + $0x60] sm:$0xff]
  %v446 = vld [vmem:[%s432 + $0x68] sm:$0xff]
  %v447 = vld [vmem:[%s432 + $0x70] sm:$0xff]
  %v448 = vld [vmem:[%s432 + $0x78] sm:$0xff]
  %449 = vmatpush.msra.mxu0 %v448
  %450 = vmatpush.msra.mxu0 %v447
  %451 = vmatpush.msra.mxu0 %v446
  %452 = vmatpush.msra.mxu0 %v445
  %453 = vmatpush.msra.mxu0 %v444
  %454 = vmatpush.msra.mxu0 %v443
  %455 = vmatpush.msra.mxu0 %v442
  %456 = vmatpush.msra.mxu0 %v441
  %457 = vmatpush.msra.mxu0 %v440
  %458 = vmatpush.msra.mxu0 %v439
  %459 = vmatpush.msra.mxu0 %v438
  %460 = vmatpush.msra.mxu0 %v437
  %461 = vmatpush.msra.mxu0 %v436
  %462 = vmatpush.msra.mxu0 %v435
  %463 = vmatpush.msra.mxu0 %v434
  %464 = vmatpush.msra.mxu0 %v433
  %465 = vmatmul.f32.gmra.mxu0 %v430
  %v466 = vpop.f32.mrf.mxu0
  %v467 = vadd.f32 0.0, %v466
  %468 = vdwg.mxu0
  %469 = vmatpush.msra.mxu0 %v252
  %470 = vmatpush.msra.mxu0 %v251
  %471 = vmatpush.msra.mxu0 %v250
  %472 = vmatpush.msra.mxu0 %v249
  %473 = vmatpush.msra.mxu0 %v248
  %474 = vmatpush.msra.mxu0 %v247
  %475 = vmatpush.msra.mxu0 %v246
  %476 = vmatpush.msra.mxu0 %v245
  %477 = vmatpush.msra.mxu0 %v244
  %478 = vmatpush.msra.mxu0 %v243
  %479 = vmatpush.msra.mxu0 %v242
  %480 = vmatpush.msra.mxu0 %v241
  %481 = vmatpush.msra.mxu0 %v240
  %482 = vmatpush.msra.mxu0 %v239
  %483 = vmatpush.msra.mxu0 %v238
  %484 = vmatpush.msra.mxu0 %v237
  %485 = vmatmul.f32.gmra.mxu0 %v235
  %v486 = vpop.f32.mrf.mxu0
  %v487 = vadd.f32 %v467, %v486
  %488 = vdwg.mxu0
  %489 = vmatpush.msra.mxu0 0.0
  %490 = vmatpush.msra.mxu0 0.0
  %491 = vmatpush.msra.mxu0 0.0
  %492 = vmatpush.msra.mxu0 0.0
  %493 = vmatpush.msra.mxu0 0.0
  %494 = vmatpush.msra.mxu0 0.0
  %495 = vmatpush.msra.mxu0 0.0
  %496 = vmatpush.msra.mxu0 0.0
  %497 = vmatpush.msra.mxu0 0.0
  %498 = vmatpush.msra.mxu0 0.0
  %499 = vmatpush.msra.mxu0 0.0
  %500 = vmatpush.msra.mxu0 0.0
  %501 = vmatpush.msra.mxu0 0.0
  %502 = vmatpush.msra.mxu0 0.0
  %503 = vmatpush.msra.mxu0 %v411
  %504 = vmatpush.msra.mxu0 %v410
  %505 = vmatmul.f32.gmra.mxu0 %v54
  %v506 = vpop.f32.mrf.mxu0
  %v507 = vadd.f32 0.0, %v506
  %508 = vmatmul.f32.gmra.mxu0 %v57
  %v509 = vpop.f32.mrf.mxu0
  %v510 = vadd.f32 0.0, %v509
  %511 = vdwg.mxu0
  %v512 = vadd.f32 %v410, %v507
  %v513 = vadd.f32 %v411, %v510
  %s514 = scalar_lea.vmem %s3, 256
  %v515 = vld [vmem:[%s514] sm:$0xff]
  %v516 = vld [vmem:[%s514 + $0x8] sm:$0xff]
  %v517 = vld [vmem:[%s514 + $0x10] sm:$0xff]
  %v518 = vld [vmem:[%s514 + $0x18] sm:$0xff]
  %v519 = vld [vmem:[%s514 + $0x20] sm:$0xff]
  %v520 = vld [vmem:[%s514 + $0x28] sm:$0xff]
  %v521 = vld [vmem:[%s514 + $0x30] sm:$0xff]
  %v522 = vld [vmem:[%s514 + $0x38] sm:$0xff]
  %v523 = vld [vmem:[%s514 + $0x40] sm:$0xff]
  %v524 = vld [vmem:[%s514 + $0x48] sm:$0xff]
  %v525 = vld [vmem:[%s514 + $0x50] sm:$0xff]
  %v526 = vld [vmem:[%s514 + $0x58] sm:$0xff]
  %v527 = vld [vmem:[%s514 + $0x60] sm:$0xff]
  %v528 = vld [vmem:[%s514 + $0x68] sm:$0xff]
  %v529 = vld [vmem:[%s514 + $0x70] sm:$0xff]
  %v530 = vld [vmem:[%s514 + $0x78] sm:$0xff]
  %s531 = scalar_lea.vmem %s4, 2
  %v532 = vld [vmem:[%s531] sm:$0x1]
  %v534 = vperm.slane %v532, 0
  %536 = vmatpush.msra.mxu0 %v530
  %537 = vmatpush.msra.mxu0 %v529
  %538 = vmatpush.msra.mxu0 %v528
  %539 = vmatpush.msra.mxu0 %v527
  %540 = vmatpush.msra.mxu0 %v526
  %541 = vmatpush.msra.mxu0 %v525
  %542 = vmatpush.msra.mxu0 %v524
  %543 = vmatpush.msra.mxu0 %v523
  %544 = vmatpush.msra.mxu0 %v522
  %545 = vmatpush.msra.mxu0 %v521
  %546 = vmatpush.msra.mxu0 %v520
  %547 = vmatpush.msra.mxu0 %v519
  %548 = vmatpush.msra.mxu0 %v518
  %549 = vmatpush.msra.mxu0 %v517
  %550 = vmatpush.msra.mxu0 %v516
  %551 = vmatpush.msra.mxu0 %v515
  %552 = vmatmul.f32.gmra.mxu0 %v512
  %v553 = vpop.f32.mrf.mxu0
  %v554 = vadd.f32 %v534, %v553
  %555 = vmatmul.f32.gmra.mxu0 %v513
  %v556 = vpop.f32.mrf.mxu0
  %v557 = vadd.f32 %v534, %v556
  %558 = vdwg.mxu0
  %v559 = vmax.f32 %v554, 0.0
  %v560 = vmax.f32 %v557, 0.0
  %s561 = scalar_lea.vmem %s5, 256
  %v562 = vld [vmem:[%s561] sm:$0xff]
  %v563 = vld [vmem:[%s561 + $0x8] sm:$0xff]
  %v564 = vld [vmem:[%s561 + $0x10] sm:$0xff]
  %v565 = vld [vmem:[%s561 + $0x18] sm:$0xff]
  %v566 = vld [vmem:[%s561 + $0x20] sm:$0xff]
  %v567 = vld [vmem:[%s561 + $0x28] sm:$0xff]
  %v568 = vld [vmem:[%s561 + $0x30] sm:$0xff]
  %v569 = vld [vmem:[%s561 + $0x38] sm:$0xff]
  %v570 = vld [vmem:[%s561 + $0x40] sm:$0xff]
  %v571 = vld [vmem:[%s561 + $0x48] sm:$0xff]
  %v572 = vld [vmem:[%s561 + $0x50] sm:$0xff]
  %v573 = vld [vmem:[%s561 + $0x58] sm:$0xff]
  %v574 = vld [vmem:[%s561 + $0x60] sm:$0xff]
  %v575 = vld [vmem:[%s561 + $0x68] sm:$0xff]
  %v576 = vld [vmem:[%s561 + $0x70] sm:$0xff]
  %v577 = vld [vmem:[%s561 + $0x78] sm:$0xff]
  %s578 = scalar_lea.vmem %s6, 2
  %v579 = vld [vmem:[%s578] sm:$0x1]
  %v581 = vperm.slane %v579, 0
  %583 = vmatpush.msra.mxu0 %v577
  %584 = vmatpush.msra.mxu0 %v576
  %585 = vmatpush.msra.mxu0 %v575
  %586 = vmatpush.msra.mxu0 %v574
  %587 = vmatpush.msra.mxu0 %v573
  %588 = vmatpush.msra.mxu0 %v572
  %589 = vmatpush.msra.mxu0 %v571
  %590 = vmatpush.msra.mxu0 %v570
  %591 = vmatpush.msra.mxu0 %v569
  %592 = vmatpush.msra.mxu0 %v568
  %593 = vmatpush.msra.mxu0 %v567
  %594 = vmatpush.msra.mxu0 %v566
  %595 = vmatpush.msra.mxu0 %v565
  %596 = vmatpush.msra.mxu0 %v564
  %597 = vmatpush.msra.mxu0 %v563
  %598 = vmatpush.msra.mxu0 %v562
  %599 = vmatmul.f32.gmra.mxu0 %v559
  %v600 = vpop.f32.mrf.mxu0
  %v601 = vadd.f32 %v581, %v600
  %602 = vmatmul.f32.gmra.mxu0 %v560
  %v603 = vpop.f32.mrf.mxu0
  %v604 = vadd.f32 %v581, %v603
  %605 = vdwg.mxu0
  %v606 = vmax.f32 %v601, 0.0
  %v607 = vmax.f32 %v604, 0.0
  %v608 = vmul.f32 %v606, %v50
  %v609 = vmul.f32 %v607, %v51
  %v610 = vadd.f32 %v608, %v609
  %v611 = vrot.slane %v610, 4
  %v612 = vadd.f32 %v610, %v611
  %v613 = vrot.slane %v612, 2
  %v614 = vadd.f32 %v612, %v613
  %v615 = vrot.slane %v614, 1
  %v616 = vadd.f32 %v614, %v615
  %v617 = vmul.f32 %v616, 0.0625
  %v618 = vmul.f32 %v608, %v608
  %v619 = vmul.f32 %v609, %v609
  %v620 = vadd.f32 %v618, %v619
  %v621 = vrot.slane %v620, 4
  %v622 = vadd.f32 %v620, %v621
  %v623 = vrot.slane %v622, 2
  %v624 = vadd.f32 %v622, %v623
  %v625 = vrot.slane %v624, 1
  %v626 = vadd.f32 %v624, %v625
  %v627 = vmul.f32 %v626, 0.0625
  %v628 = vmul.f32 %v617, %v617
  %v629 = vsub.f32 %v627, %v628
  %v630 = vmax.f32 %v629, 0.0
  %v631 = vsub.f32 %v606, %v617
  %v632 = vsub.f32 %v607, %v617
  %v633 = vadd.f32 %v630, 1e-05
  %v634 = vrsqrt.pop %v633
  %v635 = vmul.f32 %v634, %v633
  %v636 = vmul.f32 %v635, %v634
  %v637 = vmul.f32 0.5, %v636
  %v638 = vsub.f32 1.5, %v637
  %v639 = vmul.f32 %v634, %v638
  %vm640 = vweird.f32 %v633
  %vm641 = vweird.f32 %v634
  %vm642 = vmor %vm640, %vm641
  %v643 = vsel %vm642, %v634, %v639
  %v644 = vmul.f32 %v631, %v643
  %v645 = vmul.f32 %v632, %v643
  %v646 = vmul.f32 %v644, %v50
  %v647 = vmul.f32 %v645, %v51
  %648 = vmatpush.msra.mxu0 0.0
  %649 = vmatpush.msra.mxu0 0.0
  %650 = vmatpush.msra.mxu0 0.0
  %651 = vmatpush.msra.mxu0 0.0
  %652 = vmatpush.msra.mxu0 0.0
  %653 = vmatpush.msra.mxu0 0.0
  %654 = vmatpush.msra.mxu0 0.0
  %655 = vmatpush.msra.mxu0 0.0
  %656 = vmatpush.msra.mxu0 0.0
  %657 = vmatpush.msra.mxu0 0.0
  %658 = vmatpush.msra.mxu0 0.0
  %659 = vmatpush.msra.mxu0 0.0
  %660 = vmatpush.msra.mxu0 0.0
  %661 = vmatpush.msra.mxu0 0.0
  %662 = vmatpush.msra.mxu0 %v647
  %663 = vmatpush.msra.mxu0 %v646
  %664 = vmatmul.f32.gmra.mxu0 %v215
  %v665 = vpop.f32.mrf.mxu0
  %v666 = vadd.f32 0.0, %v665
  %667 = vdwg.mxu0
  %s668 = scalar_lea.vmem %s7, 256
  %v669 = vld [vmem:[%s668] sm:$0xff]
  %v670 = vld [vmem:[%s668 + $0x8] sm:$0xff]
  %v671 = vld [vmem:[%s668 + $0x10] sm:$0xff]
  %v672 = vld [vmem:[%s668 + $0x18] sm:$0xff]
  %v673 = vld [vmem:[%s668 + $0x20] sm:$0xff]
  %v674 = vld [vmem:[%s668 + $0x28] sm:$0xff]
  %v675 = vld [vmem:[%s668 + $0x30] sm:$0xff]
  %v676 = vld [vmem:[%s668 + $0x38] sm:$0xff]
  %v677 = vld [vmem:[%s668 + $0x40] sm:$0xff]
  %v678 = vld [vmem:[%s668 + $0x48] sm:$0xff]
  %v679 = vld [vmem:[%s668 + $0x50] sm:$0xff]
  %v680 = vld [vmem:[%s668 + $0x58] sm:$0xff]
  %v681 = vld [vmem:[%s668 + $0x60] sm:$0xff]
  %v682 = vld [vmem:[%s668 + $0x68] sm:$0xff]
  %v683 = vld [vmem:[%s668 + $0x70] sm:$0xff]
  %v684 = vld [vmem:[%s668 + $0x78] sm:$0xff]
  %685 = vmatpush.msra.mxu0 %v684
  %686 = vmatpush.msra.mxu0 %v683
  %687 = vmatpush.msra.mxu0 %v682
  %688 = vmatpush.msra.mxu0 %v681
  %689 = vmatpush.msra.mxu0 %v680
  %690 = vmatpush.msra.mxu0 %v679
  %691 = vmatpush.msra.mxu0 %v678
  %692 = vmatpush.msra.mxu0 %v677
  %693 = vmatpush.msra.mxu0 %v676
  %694 = vmatpush.msra.mxu0 %v675
  %695 = vmatpush.msra.mxu0 %v674
  %696 = vmatpush.msra.mxu0 %v673
  %697 = vmatpush.msra.mxu0 %v672
  %698 = vmatpush.msra.mxu0 %v671
  %699 = vmatpush.msra.mxu0 %v670
  %700 = vmatpush.msra.mxu0 %v669
  %701 = vmatmul.f32.gmra.mxu0 %v666
  %v702 = vpop.f32.mrf.mxu0
  %v703 = vadd.f32 0.0, %v702
  %704 = vdwg.mxu0
  %v705 = vadd.f32 %v487, %v703
  %v706 = vld [vmem:[%s8] sm:$0x1]
  %v708 = vperm.slane %v706, 0
  %v710 = vadd.f32 %v705, %v708
  %v711 = vmax.f32 %v710, 0.0
  %v712 = vld [vmem:[%s9] sm:$0xff]
  %v713 = vld [vmem:[%s9 + $0x8] sm:$0xff]
  %v714 = vld [vmem:[%s9 + $0x10] sm:$0xff]
  %v715 = vld [vmem:[%s9 + $0x18] sm:$0xff]
  %v716 = vld [vmem:[%s9 + $0x20] sm:$0xff]
  %v717 = vld [vmem:[%s9 + $0x28] sm:$0xff]
  %v718 = vld [vmem:[%s9 + $0x30] sm:$0xff]
  %v719 = vld [vmem:[%s9 + $0x38] sm:$0xff]
  %v720 = vld [vmem:[%s9 + $0x40] sm:$0xff]
  %v721 = vld [vmem:[%s9 + $0x48] sm:$0xff]
  %v722 = vld [vmem:[%s9 + $0x50] sm:$0xff]
  %v723 = vld [vmem:[%s9 + $0x58] sm:$0xff]
  %v724 = vld [vmem:[%s9 + $0x60] sm:$0xff]
  %v725 = vld [vmem:[%s9 + $0x68] sm:$0xff]
  %v726 = vld [vmem:[%s9 + $0x70] sm:$0xff]
  %v727 = vld [vmem:[%s9 + $0x78] sm:$0xff]
  %v728 = vld [vmem:[%s10] sm:$0x1]
  %v730 = vperm.slane %v728, 0
  %732 = vmatpush.msra.mxu0 %v727
  %733 = vmatpush.msra.mxu0 %v726
  %734 = vmatpush.msra.mxu0 %v725
  %735 = vmatpush.msra.mxu0 %v724
  %736 = vmatpush.msra.mxu0 %v723
  %737 = vmatpush.msra.mxu0 %v722
  %738 = vmatpush.msra.mxu0 %v721
  %739 = vmatpush.msra.mxu0 %v720
  %740 = vmatpush.msra.mxu0 %v719
  %741 = vmatpush.msra.mxu0 %v718
  %742 = vmatpush.msra.mxu0 %v717
  %743 = vmatpush.msra.mxu0 %v716
  %744 = vmatpush.msra.mxu0 %v715
  %745 = vmatpush.msra.mxu0 %v714
  %746 = vmatpush.msra.mxu0 %v713
  %747 = vmatpush.msra.mxu0 %v712
  %748 = vmatmul.f32.gmra.mxu0 %v711
  %v749 = vpop.f32.mrf.mxu0
  %v750 = vadd.f32 %v730, %v749
  %751 = vdwg.mxu0
  %752 = vst [vmem:[%s11] sm:$0xff] %v750
  // Predicated region
  $region46: #{simclr_forward.1} parent=0 // pred_check
    _
  $region47: #{simclr_forward.1} parent=0 // pred_check_branch
    %754 = sbr.rel (0) target = $region49
  $region48: #{simclr_forward.1} parent=0 // pred_region
    _
  $region49: #{simclr_forward.1} parent=0 // pred_fallthru
    _
  // Predicated region
  $region50: #{simclr_forward.1} parent=0 // pred_check
    _
  $region51: #{simclr_forward.1} parent=0 // pred_check_branch
    %756 = sbr.rel (0) target = $region53
  $region52: #{simclr_forward.1} parent=0 // pred_region
    _
  $region53: #{simclr_forward.1} parent=0 // pred_fallthru
    _

</llo_original>
